<compile_context>
chip_gen: v7x
topology: tpu7x:2x2x1
jax: 0.10.0
libtpu: 0.0.40
codegen_flags: <defaults>
</compile_context>

<pallas_src>
import jax
import jax.numpy as jnp
from jax.experimental import pallas as pl
from jax.experimental.pallas import tpu as pltpu


# ----------------------------------------------------------------------------
# Kernels
# ----------------------------------------------------------------------------
def _al_train_kernel(x_ref, y_ref, wf_ref, bf_ref, wg_ref, bg_ref,
                     wd_ref, bd_ref, s_ref, t_ref, tp_ref):
    # s = f(x) = x @ Wf + bf   (bf16 operands, f32 MXU accumulate, f32 bias add)
    s = jnp.dot(x_ref[...], wf_ref[...],
                preferred_element_type=jnp.float32) + bf_ref[...]
    # t = g(y) = y @ Wg + bg
    t = jnp.dot(y_ref[...], wg_ref[...],
                preferred_element_type=jnp.float32) + bg_ref[...]
    # t_prime = dy(t) = t @ Wd + bd   (fused: t never leaves VMEM)
    tp = jnp.dot(t.astype(wd_ref.dtype), wd_ref[...],
                 preferred_element_type=jnp.float32) + bd_ref[...]

    s_ref[...] = s.astype(s_ref.dtype)
    t_ref[...] = t.astype(t_ref.dtype)
    tp_ref[...] = tp.astype(tp_ref.dtype)


def _al_eval_kernel(x_ref, wf_ref, bf_ref, s_ref):
    # eval path: only s = f(x) is recomputed (t_prime is caller-cached state).
    s = jnp.dot(x_ref[...], wf_ref[...],
                preferred_element_type=jnp.float32) + bf_ref[...]
    s_ref[...] = s.astype(s_ref.dtype)


# ----------------------------------------------------------------------------
# Wrapper
# ----------------------------------------------------------------------------
def _vmem_limit_bytes(tb, dx, dy, h):
    """Tile footprint: 2x-buffered activation/output tiles + resident weights."""
    act_in = tb * (dx + dy) * 2                       # bf16 x/y tiles
    act_out = tb * (h + h + dy) * 4                   # f32 s/t/tp tiles
    weights = (dx * h + dy * h + h * dy) * 2 + (h + h + dy) * 4
    need = 2 * (act_in + act_out) + weights
    # headroom, but never above v7x's 64 MiB physical VMEM
    return int(min(64 * 1024 * 1024, max(2 * need, 16 * 1024 * 1024)))


def _pad_batch(a, b_padded):
    b = a.shape[0]
    if b == b_padded:
        return a
    return jnp.pad(a, ((0, b_padded - b), (0, 0)))


def al_component_forward(x, y, params, training=True, block_b=512):
    """Pallas implementation of ALComponent.forward.

    params (pre-transposed [in, out] layout, created once at init):
      wf_t [Dx, H] bf16, bf [1, H] f32    (f:  Dx -> H)
      wg_t [Dy, H] bf16, bg [1, H] f32    (g:  Dy -> H)
      wd_t [H, Dy] bf16, bd [1, Dy] f32   (dy: H  -> Dy)

    training=True  -> returns (s, t, t_prime)  (module returns (s, t); t_prime
                      is the cached value the module stores for .loss())
    training=False -> returns s only           (module pairs it with the
                      previously cached t_prime, which is caller-held state)
    """
    B, Dx = x.shape
    wf, bf = params["wf_t"], params["bf"]
    wg, bg = params["wg_t"], params["bg"]
    wd, bd = params["wd_t"], params["bd"]
    H = wf.shape[1]
    Dy = wd.shape[1]

    tb = max(8, min(block_b, B))
    b_pad = pl.cdiv(B, tb) * tb
    grid = (b_pad // tb,)

    resident = lambda shape: pl.BlockSpec(shape, lambda i: (0, 0))
    batched = lambda shape: pl.BlockSpec(shape, lambda i: (i, 0))

    x_in = _pad_batch(x.astype(jnp.bfloat16), b_pad)

    if not training:
        flops = 2 * b_pad * Dx * H
        bytes_acc = x_in.size * 2 + wf.size * 2 + bf.size * 4 + b_pad * H * 4
        s = pl.pallas_call(
            _al_eval_kernel,
            out_shape=jax.ShapeDtypeStruct((b_pad, H), jnp.float32),
            grid=grid,
            in_specs=[batched((tb, Dx)), resident((Dx, H)), resident((1, H))],
            out_specs=batched((tb, H)),
            compiler_params=pltpu.CompilerParams(
                dimension_semantics=("parallel",),
                vmem_limit_bytes=_vmem_limit_bytes(tb, Dx, Dy, H)),
            cost_estimate=pl.CostEstimate(
                flops=flops, transcendentals=0, bytes_accessed=bytes_acc),
        )(x_in, wf, bf)
        return s[:B]

    _, Dy_in = y.shape
    y_in = _pad_batch(y.astype(jnp.bfloat16), b_pad)

    flops = 2 * b_pad * (Dx * H + Dy_in * H + H * Dy)
    bytes_acc = ((x_in.size + y_in.size) * 2
                 + (wf.size + wg.size + wd.size) * 2
                 + (bf.size + bg.size + bd.size) * 4
                 + b_pad * (H + H + Dy) * 4)

    s, t, tp = pl.pallas_call(
        _al_train_kernel,
        out_shape=(
            jax.ShapeDtypeStruct((b_pad, H), jnp.float32),   # s = f(x)
            jax.ShapeDtypeStruct((b_pad, H), jnp.float32),   # t = g(y)
            jax.ShapeDtypeStruct((b_pad, Dy), jnp.float32),  # t_prime = dy(t)
        ),
        grid=grid,
        in_specs=[
            batched((tb, Dx)), batched((tb, Dy_in)),
            resident((Dx, H)), resident((1, H)),
            resident((Dy_in, H)), resident((1, H)),
            resident((H, Dy)), resident((1, Dy)),
        ],
        out_specs=(batched((tb, H)), batched((tb, H)), batched((tb, Dy))),
        compiler_params=pltpu.CompilerParams(
            dimension_semantics=("parallel",),
            vmem_limit_bytes=_vmem_limit_bytes(tb, Dx, Dy, H)),
        cost_estimate=pl.CostEstimate(
            flops=flops, transcendentals=0, bytes_accessed=bytes_acc),
    )(x_in, y_in, wf, bf, wg, bg, wd, bd)

    return s[:B], t[:B], tp[:B]


# ----------------------------------------------------------------------------
# Parameter init (done ONCE: weights stored pre-transposed [in, out] in bf16,
# biases reshaped to [1, out] in f32 — no per-call transposes in the wrapper).
# ----------------------------------------------------------------------------
def init_params(key, d_x, d_y, hidden):
    ks = jax.random.split(key, 6)
    scale = 0.05
    wf = scale * jax.random.normal(ks[0], (hidden, d_x), jnp.float32)  # f:  Dx->H
    bf = scale * jax.random.normal(ks[1], (hidden,), jnp.float32)
    wg = scale * jax.random.normal(ks[2], (hidden, d_y), jnp.float32)  # g:  Dy->H
    bg = scale * jax.random.normal(ks[3], (hidden,), jnp.float32)
    wd = scale * jax.random.normal(ks[4], (d_y, hidden), jnp.float32)  # dy: H->Dy
    bd = scale * jax.random.normal(ks[5], (d_y,), jnp.float32)
    return {
        "wf_t": wf.T.astype(jnp.bfloat16),   # [Dx, H]
        "bf": bf.reshape(1, hidden),
        "wg_t": wg.T.astype(jnp.bfloat16),   # [Dy, H]
        "bg": bg.reshape(1, hidden),
        "wd_t": wd.T.astype(jnp.bfloat16),   # [H, Dy]
        "bd": bd.reshape(1, d_y),
    }


if __name__ == "__main__":
    key = jax.random.PRNGKey(0)
    kx, ky, kp = jax.random.split(key, 3)

    # Small but lane-dense demo shapes (feature dims multiples of 128,
    # batch a multiple of the 128-row tile so the grid has >1 step).
    B, Dx, Dy, H = 256, 128, 128, 128
    TB = 128

    x = jax.random.normal(kx, (B, Dx), jnp.float32)
    y = jax.random.normal(ky, (B, Dy), jnp.float32)
    params = init_params(kp, Dx, Dy, H)

    # Training forward.
    s, t, t_prime = al_component_forward(x, y, params, training=True, block_b=TB)
    # Eval forward (module returns (s, cached t_prime); we recompute s only).
    s_eval = al_component_forward(x, y, params, training=False, block_b=TB)
    jax.block_until_ready((s, t, t_prime, s_eval))

    # Reference in plain JAX with the same bf16-quantized operands.
    xb = x.astype(jnp.bfloat16).astype(jnp.float32)
    yb = y.astype(jnp.bfloat16).astype(jnp.float32)
    wf = params["wf_t"].astype(jnp.float32)
    wg = params["wg_t"].astype(jnp.float32)
    wd = params["wd_t"].astype(jnp.float32)
    s_ref = xb @ wf + params["bf"]
    t_ref = yb @ wg + params["bg"]
    tp_ref = t_ref.astype(jnp.bfloat16).astype(jnp.float32) @ wd + params["bd"]

    assert jnp.allclose(s, s_ref, atol=1e-2, rtol=1e-2)
    assert jnp.allclose(t, t_ref, atol=1e-2, rtol=1e-2)
    assert jnp.allclose(t_prime, tp_ref, atol=1e-2, rtol=1e-2)
    assert jnp.allclose(s_eval, s_ref, atol=1e-2, rtol=1e-2)

    # TODO(synk): .loss() (bx / criterion_br / criterion_ae) is not part of
    # forward and depends on unspecified criterion modules; not implemented.
    print("KERNEL_OK")
</pallas_src>

<mosaic_0001>
module attributes {stable_mosaic.version = 11 : i64} {
  func.func @_al_train_kernel(%arg0: i32, %arg1: memref<128x128xbf16, #tpu.memory_space<vmem>>, %arg2: memref<128x128xbf16, #tpu.memory_space<vmem>>, %arg3: memref<128x128xbf16, #tpu.memory_space<vmem>>, %arg4: memref<1x128xf32, #tpu.memory_space<vmem>>, %arg5: memref<128x128xbf16, #tpu.memory_space<vmem>>, %arg6: memref<1x128xf32, #tpu.memory_space<vmem>>, %arg7: memref<128x128xbf16, #tpu.memory_space<vmem>>, %arg8: memref<1x128xf32, #tpu.memory_space<vmem>>, %arg9: memref<128x128xf32, #tpu.memory_space<vmem>>, %arg10: memref<128x128xf32, #tpu.memory_space<vmem>>, %arg11: memref<128x128xf32, #tpu.memory_space<vmem>>) attributes {dimension_semantics = [#tpu.dimension_semantics<parallel>], iteration_bounds = array<i64: 2>, scalar_prefetch = 0 : i64, scratch_operands = 0 : i64, tpu.core_type = #tpu.core_type<tc>, window_params = [{transform_indices = @transform_0, window_bounds = array<i64: 128, 128>}, {transform_indices = @transform_1, window_bounds = array<i64: 128, 128>}, {pipeline_mode = #tpu.pipeline_mode<synchronous>, transform_indices = @transform_2, window_bounds = array<i64: 128, 128>}, {pipeline_mode = #tpu.pipeline_mode<synchronous>, transform_indices = @transform_3, window_bounds = array<i64: 1, 128>}, {pipeline_mode = #tpu.pipeline_mode<synchronous>, transform_indices = @transform_4, window_bounds = array<i64: 128, 128>}, {pipeline_mode = #tpu.pipeline_mode<synchronous>, transform_indices = @transform_5, window_bounds = array<i64: 1, 128>}, {pipeline_mode = #tpu.pipeline_mode<synchronous>, transform_indices = @transform_6, window_bounds = array<i64: 128, 128>}, {pipeline_mode = #tpu.pipeline_mode<synchronous>, transform_indices = @transform_7, window_bounds = array<i64: 1, 128>}, {transform_indices = @transform_8, window_bounds = array<i64: 128, 128>}, {transform_indices = @transform_9, window_bounds = array<i64: 128, 128>}, {transform_indices = @transform_10, window_bounds = array<i64: 128, 128>}]} {
    %c0 = arith.constant 0 : index
    %c0_0 = arith.constant 0 : index
    %0 = vector.load %arg1[%c0, %c0_0] : memref<128x128xbf16, #tpu.memory_space<vmem>>, vector<128x128xbf16>
    %c0_1 = arith.constant 0 : index
    %c0_2 = arith.constant 0 : index
    %1 = vector.load %arg3[%c0_1, %c0_2] : memref<128x128xbf16, #tpu.memory_space<vmem>>, vector<128x128xbf16>
    %cst = arith.constant dense<0.000000e+00> : vector<128x128xf32>
    %2 = tpu.matmul %0, %1, %cst {dimension_numbers = #tpu.dot_dimension_numbers<[1], [0], [0], [1], [0, 0, 1, 1], [], []>} : vector<128x128xbf16>, vector<128x128xbf16>, vector<128x128xf32> -> vector<128x128xf32>
    %c0_3 = arith.constant 0 : index
    %c0_4 = arith.constant 0 : index
    %3 = vector.load %arg4[%c0_3, %c0_4] : memref<1x128xf32, #tpu.memory_space<vmem>>, vector<1x128xf32>
    %4 = vector.broadcast %3 : vector<1x128xf32> to vector<128x128xf32>
    %5 = arith.addf %2, %4 : vector<128x128xf32>
    %c0_5 = arith.constant 0 : index
    %c0_6 = arith.constant 0 : index
    %6 = vector.load %arg2[%c0_5, %c0_6] : memref<128x128xbf16, #tpu.memory_space<vmem>>, vector<128x128xbf16>
    %c0_7 = arith.constant 0 : index
    %c0_8 = arith.constant 0 : index
    %7 = vector.load %arg5[%c0_7, %c0_8] : memref<128x128xbf16, #tpu.memory_space<vmem>>, vector<128x128xbf16>
    %cst_9 = arith.constant dense<0.000000e+00> : vector<128x128xf32>
    %8 = tpu.matmul %6, %7, %cst_9 {dimension_numbers = #tpu.dot_dimension_numbers<[1], [0], [0], [1], [0, 0, 1, 1], [], []>} : vector<128x128xbf16>, vector<128x128xbf16>, vector<128x128xf32> -> vector<128x128xf32>
    %c0_10 = arith.constant 0 : index
    %c0_11 = arith.constant 0 : index
    %9 = vector.load %arg6[%c0_10, %c0_11] : memref<1x128xf32, #tpu.memory_space<vmem>>, vector<1x128xf32>
    %10 = vector.broadcast %9 : vector<1x128xf32> to vector<128x128xf32>
    %11 = arith.addf %8, %10 : vector<128x128xf32>
    %12 = arith.truncf %11 : vector<128x128xf32> to vector<128x128xbf16>
    %c0_12 = arith.constant 0 : index
    %c0_13 = arith.constant 0 : index
    %13 = vector.load %arg7[%c0_12, %c0_13] : memref<128x128xbf16, #tpu.memory_space<vmem>>, vector<128x128xbf16>
    %cst_14 = arith.constant dense<0.000000e+00> : vector<128x128xf32>
    %14 = tpu.matmul %12, %13, %cst_14 {dimension_numbers = #tpu.dot_dimension_numbers<[1], [0], [0], [1], [0, 0, 1, 1], [], []>} : vector<128x128xbf16>, vector<128x128xbf16>, vector<128x128xf32> -> vector<128x128xf32>
    %c0_15 = arith.constant 0 : index
    %c0_16 = arith.constant 0 : index
    %15 = vector.load %arg8[%c0_15, %c0_16] : memref<1x128xf32, #tpu.memory_space<vmem>>, vector<1x128xf32>
    %16 = vector.broadcast %15 : vector<1x128xf32> to vector<128x128xf32>
    %17 = arith.addf %14, %16 : vector<128x128xf32>
    %c0_17 = arith.constant 0 : index
    %c0_18 = arith.constant 0 : index
    %18 = vector.load %arg9[%c0_17, %c0_18] : memref<128x128xf32, #tpu.memory_space<vmem>>, vector<128x128xf32>
    tpu.vector_store %arg9[%c0_17, %c0_18], %5 {strides = array<i32>} : memref<128x128xf32, #tpu.memory_space<vmem>>, vector<128x128xf32>,
    %c0_19 = arith.constant 0 : index
    %c0_20 = arith.constant 0 : index
    %19 = vector.load %arg10[%c0_19, %c0_20] : memref<128x128xf32, #tpu.memory_space<vmem>>, vector<128x128xf32>
    tpu.vector_store %arg10[%c0_19, %c0_20], %11 {strides = array<i32>} : memref<128x128xf32, #tpu.memory_space<vmem>>, vector<128x128xf32>,
    %c0_21 = arith.constant 0 : index
    %c0_22 = arith.constant 0 : index
    %20 = vector.load %arg11[%c0_21, %c0_22] : memref<128x128xf32, #tpu.memory_space<vmem>>, vector<128x128xf32>
    tpu.vector_store %arg11[%c0_21, %c0_22], %17 {strides = array<i32>} : memref<128x128xf32, #tpu.memory_space<vmem>>, vector<128x128xf32>,
    return
  }
  func.func @transform_0(%arg0: i32) -> (i32, i32) {
    %c0_i32 = arith.constant 0 : i32
    %c0_i32_0 = arith.constant 0 : i32
    return %arg0, %c0_i32 : i32, i32
  }
  func.func @transform_1(%arg0: i32) -> (i32, i32) {
    %c0_i32 = arith.constant 0 : i32
    %c0_i32_0 = arith.constant 0 : i32
    return %arg0, %c0_i32 : i32, i32
  }
  func.func @transform_2(%arg0: i32) -> (i32, i32) {
    %c0_i32 = arith.constant 0 : i32
    %c0_i32_0 = arith.constant 0 : i32
    %c0_i32_1 = arith.constant 0 : i32
    return %c0_i32, %c0_i32_0 : i32, i32
  }
  func.func @transform_3(%arg0: i32) -> (i32, i32) {
    %c0_i32 = arith.constant 0 : i32
    %c0_i32_0 = arith.constant 0 : i32
    %c0_i32_1 = arith.constant 0 : i32
    return %c0_i32, %c0_i32_0 : i32, i32
  }
  func.func @transform_4(%arg0: i32) -> (i32, i32) {
    %c0_i32 = arith.constant 0 : i32
    %c0_i32_0 = arith.constant 0 : i32
    %c0_i32_1 = arith.constant 0 : i32
    return %c0_i32, %c0_i32_0 : i32, i32
  }
  func.func @transform_5(%arg0: i32) -> (i32, i32) {
    %c0_i32 = arith.constant 0 : i32
    %c0_i32_0 = arith.constant 0 : i32
    %c0_i32_1 = arith.constant 0 : i32
    return %c0_i32, %c0_i32_0 : i32, i32
  }
  func.func @transform_6(%arg0: i32) -> (i32, i32) {
    %c0_i32 = arith.constant 0 : i32
    %c0_i32_0 = arith.constant 0 : i32
    %c0_i32_1 = arith.constant 0 : i32
    return %c0_i32, %c0_i32_0 : i32, i32
  }
  func.func @transform_7(%arg0: i32) -> (i32, i32) {
    %c0_i32 = arith.constant 0 : i32
    %c0_i32_0 = arith.constant 0 : i32
    %c0_i32_1 = arith.constant 0 : i32
    return %c0_i32, %c0_i32_0 : i32, i32
  }
  func.func @transform_8(%arg0: i32) -> (i32, i32) {
    %c0_i32 = arith.constant 0 : i32
    %c0_i32_0 = arith.constant 0 : i32
    return %arg0, %c0_i32 : i32, i32
  }
  func.func @transform_9(%arg0: i32) -> (i32, i32) {
    %c0_i32 = arith.constant 0 : i32
    %c0_i32_0 = arith.constant 0 : i32
    return %arg0, %c0_i32 : i32, i32
  }
  func.func @transform_10(%arg0: i32) -> (i32, i32) {
    %c0_i32 = arith.constant 0 : i32
    %c0_i32_0 = arith.constant 0 : i32
    return %arg0, %c0_i32 : i32, i32
  }
}

</mosaic_0001>

<llo_original>
// kernel: tpu_custom_call.1
$region0: #{tpu_custom_call.1}
  #allocation0 [shape = 'u32[]', space=smem, size = 0x4, offset = 0x4, fixed_abs, tag = 'smem constant byte address 0x4 - core index']
  #allocation1 [shape = 'u32[144,128]{1,0:T(1,128)}', space=vmem, size = 0x12000, scoped, tag = 'internal scratch']
  %s0 = inlined_call_operand.hbm [shape: bf16[256,128], index: 0, kind: input, shape index: {}]
  %s1 = inlined_call_operand.hbm [shape: bf16[256,128], index: 1, kind: input, shape index: {}]
  %s2 = inlined_call_operand.hbm [shape: bf16[128,128], index: 2, kind: input, shape index: {}]
  %s3 = inlined_call_operand.vmem [shape: f32[1,128], index: 3, kind: input, shape index: {}]
  %s4 = inlined_call_operand.hbm [shape: bf16[128,128], index: 4, kind: input, shape index: {}]
  %s5 = inlined_call_operand.vmem [shape: f32[1,128], index: 5, kind: input, shape index: {}]
  %s6 = inlined_call_operand.hbm [shape: bf16[128,128], index: 6, kind: input, shape index: {}]
  %s7 = inlined_call_operand.vmem [shape: f32[1,128], index: 7, kind: input, shape index: {}]
  %s8 = inlined_call_operand.hbm [shape: f32[256,128], index: 8, kind: output, shape index: {0}]
  %s9 = inlined_call_operand.hbm [shape: f32[256,128], index: 9, kind: output, shape index: {1}]
  %s10 = inlined_call_operand.hbm [shape: f32[256,128], index: 10, kind: output, shape index: {2}]
  %11 = xla_tuple %s8, %s9, %s10
  %s12 = sld [smem:[#allocation0]]
  $region101: #{tpu_custom_call.1} parent=0
    _
  %s14 = ssub.s32 1, %s12
  %s15 = scalar_select 0, %s14, %s12
  $region1: #{tpu_custom_call.1} parent=0
    #allocation2 [shape = 'u8[65536]{0}', space=vmem, size = 0x10000, scoped, tag = 'input window, operand 0']
    #allocation3 [shape = 's32[2]{0}', space=sflag, size = 0x8, scoped, tag = 'scoped memory for tpu_custom_call.1']
    #allocation4 [shape = 's32[2]{0}', space=sflag, size = 0x8, scoped, tag = 'scoped memory for tpu_custom_call.1']
    #allocation5 [shape = 'u8[65536]{0}', space=vmem, size = 0x10000, scoped, tag = 'input window, operand 1']
    #allocation6 [shape = 's32[2]{0}', space=sflag, size = 0x8, scoped, tag = 'scoped memory for tpu_custom_call.1']
    #allocation7 [shape = 'u8[32768]{0}', space=vmem, size = 0x8000, scoped, tag = 'input window, operand 2, single buffered']
    #allocation8 [shape = 'u8[32768]{0}', space=vmem, size = 0x8000, scoped, tag = 'input window, operand 4, single buffered']
    #allocation9 [shape = 's32[1]{0}', space=sflag, size = 0x4, scoped, tag = 'scoped memory for tpu_custom_call.1']
    #allocation10 [shape = 'u8[32768]{0}', space=vmem, size = 0x8000, scoped, tag = 'input window, operand 6, single buffered']
    #allocation11 [shape = 'u8[131072]{0}', space=vmem, size = 0x20000, scoped, tag = 'output window, operand 0']
    #allocation12 [shape = 'u8[131072]{0}', space=vmem, size = 0x20000, scoped, tag = 'output window, operand 1']
    #allocation13 [shape = 's32[2]{0}', space=sflag, size = 0x8, scoped, tag = 'scoped memory for tpu_custom_call.1']
    #allocation14 [shape = 'u8[131072]{0}', space=vmem, size = 0x20000, scoped, tag = 'output window, operand 2']
    %16 = vsyncpa [#allocation3], 0
    %s17 = scalar_lea.sflag [#allocation3], 1
    %18 = vsyncpa %s17, 0
    %19 = vsyncpa [#allocation6], 0
    %s20 = scalar_lea.sflag [#allocation6], 1
    %21 = vsyncpa %s20, 0
    %22 = vsyncpa [#allocation9], 0
    %23 = vsyncpa [#allocation4], 0
    %s24 = scalar_lea.sflag [#allocation4], 1
    %25 = vsyncpa %s24, 0
    %26 = vsyncpa [#allocation13], 0
    %s27 = scalar_lea.sflag [#allocation13], 1
    %28 = vsyncpa %s27, 0
    loop: start=0, step=1, limit=4
    $region2: #{tpu_custom_call.1} parent=1 // loop_pre_header
      _
    $region3: #{tpu_custom_call.1} parent=1 // loop_header
      %s30 = sphi 0, %s34
      %p31 = scmp.ge.s32.totalorder %s30, 4
      %s40 = sphi 0, %s42
      %s43 = sphi 0, %s40
      %s44 = sphi 0, %s43
      %s60 = sphi 0, %s44
      %s66 = sphi 0, %s68
      %s69 = sphi 0, %s66
      %s70 = sphi 0, %s69
      %s86 = sphi 0, %s70
      %s90 = sphi 0, %s90
      %s92 = sphi 0, %s90
      %s93 = sphi 0, %s92
      %s107 = sphi 0, %s93
      %s111 = sphi 0, %s111
      %s113 = sphi 0, %s111
      %s114 = sphi 0, %s113
      %s128 = sphi 0, %s114
      %s132 = sphi 0, %s132
      %s134 = sphi 0, %s132
      %s135 = sphi 0, %s134
      %s149 = sphi 0, %s135
      %s153 = sphi 0, %s153
      %s155 = sphi 0, %s153
      %s156 = sphi 0, %s155
      %s170 = sphi 0, %s156
      %s174 = sphi 0, %s174
      %s176 = sphi 0, %s174
      %s177 = sphi 0, %s176
      %s191 = sphi 0, %s177
      %s195 = sphi 0, %s195
      %s197 = sphi 0, %s195
      %s198 = sphi 0, %s197
      %s212 = sphi 0, %s198
      %s218 = sphi 0, %s220
      %s221 = sphi 0, %s218
      %s222 = sphi 0, %s221
      %s238 = sphi 0, %s222
      %s244 = sphi 0, %s246
      %s247 = sphi 0, %s244
      %s248 = sphi 0, %s247
      %s264 = sphi 0, %s248
      %s270 = sphi 0, %s272
      %s273 = sphi 0, %s270
      %s274 = sphi 0, %s273
      %s290 = sphi 0, %s274
    $region4: #{tpu_custom_call.1} parent=1 // loop_header_branch
      %33 = sbr.rel (%p31) target = $region8
    $region5: #{tpu_custom_call.1} parent=1 // loop_body
      %s35 = ssub.s32 %s30, 1
      %s36 = ssub.s32 %s30, 2
      %s37 = sadd.s32 %s30, 1
      %s38 = ssub.s32 %s30, %s37
      %p39 = scmp.eq.s32.totalorder %s38, 0
      %s41 = sadd.s32 %s40, 1
      %s42 = scalar_select %p39, %s40, %s41
      %p45 = pneg %p39
      %p46 = scmp.eq.s32.totalorder %s30, 1
      %p47 = por %p45, %p46
      %p48 = scmp.ne.s32.totalorder %s40, %s43
      %p49 = scmp.eq.s32.totalorder %s30, 0
      %p50 = por %p48, %p49
      %p51 = scmp.ne.s32.totalorder %s40, %s43
      %p52 = scmp.eq.s32.totalorder %s35, 1
      %p53 = por %p51, %p52
      %p54 = scmp.ne.s32.totalorder %s43, %s44
      %p55 = scmp.eq.s32.totalorder %s35, 0
      %p56 = por %p54, %p55
      %p57 = scmp.ne.s32.totalorder %s43, %s44
      %p58 = scmp.eq.s32.totalorder %s36, 1
      %p59 = por %p57, %p58
      %p61 = scmp.ne.s32.totalorder %s44, %s60
      %p62 = scmp.eq.s32.totalorder %s36, 0
      %p63 = por %p61, %p62
      %s64 = ssub.s32 %s30, %s37
      %p65 = scmp.eq.s32.totalorder %s64, 0
      %s67 = sadd.s32 %s66, 1
      %s68 = scalar_select %p65, %s66, %s67
      %p71 = pneg %p65
      %p72 = scmp.eq.s32.totalorder %s30, 1
      %p73 = por %p71, %p72
      %p74 = scmp.ne.s32.totalorder %s66, %s69
      %p75 = scmp.eq.s32.totalorder %s30, 0
      %p76 = por %p74, %p75
      %p77 = scmp.ne.s32.totalorder %s66, %s69
      %p78 = scmp.eq.s32.totalorder %s35, 1
      %p79 = por %p77, %p78
      %p80 = scmp.ne.s32.totalorder %s69, %s70
      %p81 = scmp.eq.s32.totalorder %s35, 0
      %p82 = por %p80, %p81
      %p83 = scmp.ne.s32.totalorder %s69, %s70
      %p84 = scmp.eq.s32.totalorder %s36, 1
      %p85 = por %p83, %p84
      %p87 = scmp.ne.s32.totalorder %s70, %s86
      %p88 = scmp.eq.s32.totalorder %s36, 0
      %p89 = por %p87, %p88
      %s91 = sadd.s32 %s90, 1
      %p94 = scmp.eq.s32.totalorder %s30, 1
      %p95 = scmp.ne.s32.totalorder %s90, %s92
      %p96 = scmp.eq.s32.totalorder %s30, 0
      %p97 = por %p95, %p96
      %p98 = scmp.ne.s32.totalorder %s90, %s92
      %p99 = scmp.eq.s32.totalorder %s35, 1
      %p100 = por %p98, %p99
      %p101 = scmp.ne.s32.totalorder %s92, %s93
      %p102 = scmp.eq.s32.totalorder %s35, 0
      %p103 = por %p101, %p102
      %p104 = scmp.ne.s32.totalorder %s92, %s93
      %p105 = scmp.eq.s32.totalorder %s36, 1
      %p106 = por %p104, %p105
      %p108 = scmp.ne.s32.totalorder %s93, %s107
      %p109 = scmp.eq.s32.totalorder %s36, 0
      %p110 = por %p108, %p109
      %s112 = sadd.s32 %s111, 1
      %p115 = scmp.eq.s32.totalorder %s30, 1
      %p116 = scmp.ne.s32.totalorder %s111, %s113
      %p117 = scmp.eq.s32.totalorder %s30, 0
      %p118 = por %p116, %p117
      %p119 = scmp.ne.s32.totalorder %s111, %s113
      %p120 = scmp.eq.s32.totalorder %s35, 1
      %p121 = por %p119, %p120
      %p122 = scmp.ne.s32.totalorder %s113, %s114
      %p123 = scmp.eq.s32.totalorder %s35, 0
      %p124 = por %p122, %p123
      %p125 = scmp.ne.s32.totalorder %s113, %s114
      %p126 = scmp.eq.s32.totalorder %s36, 1
      %p127 = por %p125, %p126
      %p129 = scmp.ne.s32.totalorder %s114, %s128
      %p130 = scmp.eq.s32.totalorder %s36, 0
      %p131 = por %p129, %p130
      %s133 = sadd.s32 %s132, 1
      %p136 = scmp.eq.s32.totalorder %s30, 1
      %p137 = scmp.ne.s32.totalorder %s132, %s134
      %p138 = scmp.eq.s32.totalorder %s30, 0
      %p139 = por %p137, %p138
      %p140 = scmp.ne.s32.totalorder %s132, %s134
      %p141 = scmp.eq.s32.totalorder %s35, 1
      %p142 = por %p140, %p141
      %p143 = scmp.ne.s32.totalorder %s134, %s135
      %p144 = scmp.eq.s32.totalorder %s35, 0
      %p145 = por %p143, %p144
      %p146 = scmp.ne.s32.totalorder %s134, %s135
      %p147 = scmp.eq.s32.totalorder %s36, 1
      %p148 = por %p146, %p147
      %p150 = scmp.ne.s32.totalorder %s135, %s149
      %p151 = scmp.eq.s32.totalorder %s36, 0
      %p152 = por %p150, %p151
      %s154 = sadd.s32 %s153, 1
      %p157 = scmp.eq.s32.totalorder %s30, 1
      %p158 = scmp.ne.s32.totalorder %s153, %s155
      %p159 = scmp.eq.s32.totalorder %s30, 0
      %p160 = por %p158, %p159
      %p161 = scmp.ne.s32.totalorder %s153, %s155
      %p162 = scmp.eq.s32.totalorder %s35, 1
      %p163 = por %p161, %p162
      %p164 = scmp.ne.s32.totalorder %s155, %s156
      %p165 = scmp.eq.s32.totalorder %s35, 0
      %p166 = por %p164, %p165
      %p167 = scmp.ne.s32.totalorder %s155, %s156
      %p168 = scmp.eq.s32.totalorder %s36, 1
      %p169 = por %p167, %p168
      %p171 = scmp.ne.s32.totalorder %s156, %s170
      %p172 = scmp.eq.s32.totalorder %s36, 0
      %p173 = por %p171, %p172
      %s175 = sadd.s32 %s174, 1
      %p178 = scmp.eq.s32.totalorder %s30, 1
      %p179 = scmp.ne.s32.totalorder %s174, %s176
      %p180 = scmp.eq.s32.totalorder %s30, 0
      %p181 = por %p179, %p180
      %p182 = scmp.ne.s32.totalorder %s174, %s176
      %p183 = scmp.eq.s32.totalorder %s35, 1
      %p184 = por %p182, %p183
      %p185 = scmp.ne.s32.totalorder %s176, %s177
      %p186 = scmp.eq.s32.totalorder %s35, 0
      %p187 = por %p185, %p186
      %p188 = scmp.ne.s32.totalorder %s176, %s177
      %p189 = scmp.eq.s32.totalorder %s36, 1
      %p190 = por %p188, %p189
      %p192 = scmp.ne.s32.totalorder %s177, %s191
      %p193 = scmp.eq.s32.totalorder %s36, 0
      %p194 = por %p192, %p193
      %s196 = sadd.s32 %s195, 1
      %p199 = scmp.eq.s32.totalorder %s30, 1
      %p200 = scmp.ne.s32.totalorder %s195, %s197
      %p201 = scmp.eq.s32.totalorder %s30, 0
      %p202 = por %p200, %p201
      %p203 = scmp.ne.s32.totalorder %s195, %s197
      %p204 = scmp.eq.s32.totalorder %s35, 1
      %p205 = por %p203, %p204
      %p206 = scmp.ne.s32.totalorder %s197, %s198
      %p207 = scmp.eq.s32.totalorder %s35, 0
      %p208 = por %p206, %p207
      %p209 = scmp.ne.s32.totalorder %s197, %s198
      %p210 = scmp.eq.s32.totalorder %s36, 1
      %p211 = por %p209, %p210
      %p213 = scmp.ne.s32.totalorder %s198, %s212
      %p214 = scmp.eq.s32.totalorder %s36, 0
      %p215 = por %p213, %p214
      %s216 = ssub.s32 %s30, %s37
      %p217 = scmp.eq.s32.totalorder %s216, 0
      %s219 = sadd.s32 %s218, 1
      %s220 = scalar_select %p217, %s218, %s219
      %p223 = pneg %p217
      %p224 = scmp.eq.s32.totalorder %s30, 1
      %p225 = por %p223, %p224
      %p226 = scmp.ne.s32.totalorder %s218, %s221
      %p227 = scmp.eq.s32.totalorder %s30, 0
      %p228 = por %p226, %p227
      %p229 = scmp.ne.s32.totalorder %s218, %s221
      %p230 = scmp.eq.s32.totalorder %s35, 1
      %p231 = por %p229, %p230
      %p232 = scmp.ne.s32.totalorder %s221, %s222
      %p233 = scmp.eq.s32.totalorder %s35, 0
      %p234 = por %p232, %p233
      %p235 = scmp.ne.s32.totalorder %s221, %s222
      %p236 = scmp.eq.s32.totalorder %s36, 1
      %p237 = por %p235, %p236
      %p239 = scmp.ne.s32.totalorder %s222, %s238
      %p240 = scmp.eq.s32.totalorder %s36, 0
      %p241 = por %p239, %p240
      %s242 = ssub.s32 %s30, %s37
      %p243 = scmp.eq.s32.totalorder %s242, 0
      %s245 = sadd.s32 %s244, 1
      %s246 = scalar_select %p243, %s244, %s245
      %p249 = pneg %p243
      %p250 = scmp.eq.s32.totalorder %s30, 1
      %p251 = por %p249, %p250
      %p252 = scmp.ne.s32.totalorder %s244, %s247
      %p253 = scmp.eq.s32.totalorder %s30, 0
      %p254 = por %p252, %p253
      %p255 = scmp.ne.s32.totalorder %s244, %s247
      %p256 = scmp.eq.s32.totalorder %s35, 1
      %p257 = por %p255, %p256
      %p258 = scmp.ne.s32.totalorder %s247, %s248
      %p259 = scmp.eq.s32.totalorder %s35, 0
      %p260 = por %p258, %p259
      %p261 = scmp.ne.s32.totalorder %s247, %s248
      %p262 = scmp.eq.s32.totalorder %s36, 1
      %p263 = por %p261, %p262
      %p265 = scmp.ne.s32.totalorder %s248, %s264
      %p266 = scmp.eq.s32.totalorder %s36, 0
      %p267 = por %p265, %p266
      %s268 = ssub.s32 %s30, %s37
      %p269 = scmp.eq.s32.totalorder %s268, 0
      %s271 = sadd.s32 %s270, 1
      %s272 = scalar_select %p269, %s270, %s271
      %p275 = pneg %p269
      %p276 = scmp.eq.s32.totalorder %s30, 1
      %p277 = por %p275, %p276
      %p278 = scmp.ne.s32.totalorder %s270, %s273
      %p279 = scmp.eq.s32.totalorder %s30, 0
      %p280 = por %p278, %p279
      %p281 = scmp.ne.s32.totalorder %s270, %s273
      %p282 = scmp.eq.s32.totalorder %s35, 1
      %p283 = por %p281, %p282
      %p284 = scmp.ne.s32.totalorder %s273, %s274
      %p285 = scmp.eq.s32.totalorder %s35, 0
      %p286 = por %p284, %p285
      %p287 = scmp.ne.s32.totalorder %s273, %s274
      %p288 = scmp.eq.s32.totalorder %s36, 1
      %p289 = por %p287, %p288
      %p291 = scmp.ne.s32.totalorder %s274, %s290
      %p292 = scmp.eq.s32.totalorder %s36, 0
      %p293 = por %p291, %p292
      %p294 = scmp.le.s32.totalorder 1, %s30
      %p295 = scmp.lt.s32.totalorder %s30, 3
      %p296 = pnand %p294, %p295
      %p297 = pneg %p296
      // Predicated region
      $region9: #{tpu_custom_call.1} parent=5 // pred_check
        _
      $region10: #{tpu_custom_call.1} parent=5 // pred_check_branch
        %299 = sbr.rel (%p296) target = $region12
      $region11: #{tpu_custom_call.1} parent=5 // pred_region
        %s300 = ssub.s32 %s30, 1
        // Predicated region
        $region13: #{tpu_custom_call.1} parent=11 // pred_check
          %p301 = pneg %p103
        $region14: #{tpu_custom_call.1} parent=11 // pred_check_branch
          %303 = sbr.rel (%p301) target = $region16
        $region15: #{tpu_custom_call.1} parent=11 // pred_region
          %s305 = ssub.s32 1024, 1024
          %306 = vsyncadd [#allocation6], %s305
          %s307 = sshll.u32 [#allocation7], 4
          %s308 = int_to_ptr.vmem [resolvable:$true] %s307
          %313 = dma.hbm_to_vmem [thread:$0]  %s2, 1024, %s308, [#allocation6], 64, 64, 4
        $region16: #{tpu_custom_call.1} parent=11 // pred_fallthru
          _
        // Predicated region
        $region17: #{tpu_custom_call.1} parent=11 // pred_check
          %p314 = pneg %p124
        $region18: #{tpu_custom_call.1} parent=11 // pred_check_branch
          %316 = sbr.rel (%p314) target = $region20
        $region19: #{tpu_custom_call.1} parent=11 // pred_region
          _
        $region20: #{tpu_custom_call.1} parent=11 // pred_fallthru
          _
        // Predicated region
        $region21: #{tpu_custom_call.1} parent=11 // pred_check
          %p317 = pneg %p145
        $region22: #{tpu_custom_call.1} parent=11 // pred_check_branch
          %319 = sbr.rel (%p317) target = $region24
        $region23: #{tpu_custom_call.1} parent=11 // pred_region
          %s321 = ssub.s32 1024, 1024
          %322 = vsyncadd [#allocation9], %s321
          %s323 = sshll.u32 [#allocation8], 4
          %s324 = int_to_ptr.vmem [resolvable:$true] %s323
          %329 = dma.hbm_to_vmem [thread:$0]  %s4, 1024, %s324, [#allocation9], 64, 64, 4
        $region24: #{tpu_custom_call.1} parent=11 // pred_fallthru
          _
        // Predicated region
        $region25: #{tpu_custom_call.1} parent=11 // pred_check
          %p330 = pneg %p166
        $region26: #{tpu_custom_call.1} parent=11 // pred_check_branch
          %332 = sbr.rel (%p330) target = $region28
        $region27: #{tpu_custom_call.1} parent=11 // pred_region
          _
        $region28: #{tpu_custom_call.1} parent=11 // pred_fallthru
          _
        // Predicated region
        $region29: #{tpu_custom_call.1} parent=11 // pred_check
          %p333 = pneg %p187
        $region30: #{tpu_custom_call.1} parent=11 // pred_check_branch
          %335 = sbr.rel (%p333) target = $region32
        $region31: #{tpu_custom_call.1} parent=11 // pred_region
          %s337 = ssub.s32 1024, 1024
          %338 = vsyncadd [#allocation9], %s337
          %s339 = sshll.u32 [#allocation10], 4
          %s340 = int_to_ptr.vmem [resolvable:$true] %s339
          %345 = dma.hbm_to_vmem [thread:$0]  %s6, 1024, %s340, [#allocation9], 64, 64, 4
        $region32: #{tpu_custom_call.1} parent=11 // pred_fallthru
          _
        // Predicated region
        $region33: #{tpu_custom_call.1} parent=11 // pred_check
          %p346 = pneg %p208
        $region34: #{tpu_custom_call.1} parent=11 // pred_check_branch
          %348 = sbr.rel (%p346) target = $region36
        $region35: #{tpu_custom_call.1} parent=11 // pred_region
          _
        $region36: #{tpu_custom_call.1} parent=11 // pred_fallthru
          _
      $region12: #{tpu_custom_call.1} parent=5 // pred_fallthru
        _
      %p349 = scmp.lt.s32.totalorder %s30, 2
      // Predicated region
      $region37: #{tpu_custom_call.1} parent=5 // pred_check
        %p350 = pneg %p349
      $region38: #{tpu_custom_call.1} parent=5 // pred_check_branch
        %352 = sbr.rel (%p350) target = $region40
      $region39: #{tpu_custom_call.1} parent=5 // pred_region
        // Predicated region
        $region41: #{tpu_custom_call.1} parent=39 // pred_check
          %p353 = pneg %p50
        $region42: #{tpu_custom_call.1} parent=39 // pred_check_branch
          %355 = sbr.rel (%p353) target = $region44
        $region43: #{tpu_custom_call.1} parent=39 // pred_region
          %s356 = sand.u32 %s40, 1
          %s357 = scalar_lea.sflag [#allocation3], %s356
          %s358 = sand.u32 %s40, 1
          %s359 = smul.addr %s358, 64
          %s360 = scalar_lea.vmem [#allocation2], %s359
          %s361 = smul.u32 16, %s30
          %s363 = ssub.s32 1024, 1024
          %364 = vsyncadd %s357, %s363
          %s365 = smul.addr %s361, 64
          %s366 = scalar_lea.hbm %s0, %s365
          %s367 = sshll.u32 %s360, 4
          %s368 = int_to_ptr.vmem [resolvable:$true] %s367
          %373 = dma.hbm_to_vmem [thread:$0]  %s366, 1024, %s368, %s357, 64, 64, 4
        $region44: #{tpu_custom_call.1} parent=39 // pred_fallthru
          _
        // Predicated region
        $region45: #{tpu_custom_call.1} parent=39 // pred_check
          %p374 = pneg %p76
        $region46: #{tpu_custom_call.1} parent=39 // pred_check_branch
          %376 = sbr.rel (%p374) target = $region48
        $region47: #{tpu_custom_call.1} parent=39 // pred_region
          %s377 = sand.u32 %s30, 1
          %s378 = scalar_lea.sflag [#allocation6], %s377
          %s379 = sand.u32 %s66, 1
          %s380 = smul.addr %s379, 64
          %s381 = scalar_lea.vmem [#allocation5], %s380
          %s382 = smul.u32 16, %s30
          %s384 = ssub.s32 1024, 1024
          %385 = vsyncadd %s378, %s384
          %s386 = smul.addr %s382, 64
          %s387 = scalar_lea.hbm %s1, %s386
          %s388 = sshll.u32 %s381, 4
          %s389 = int_to_ptr.vmem [resolvable:$true] %s388
          %394 = dma.hbm_to_vmem [thread:$0]  %s387, 1024, %s389, %s378, 64, 64, 4
        $region48: #{tpu_custom_call.1} parent=39 // pred_fallthru
          _
      $region40: #{tpu_custom_call.1} parent=5 // pred_fallthru
        _
      %p395 = scmp.le.s32.totalorder 1, %s30
      %p396 = scmp.lt.s32.totalorder %s30, 3
      %p397 = pnand %p395, %p396
      %p398 = pneg %p397
      // Predicated region
      $region49: #{tpu_custom_call.1} parent=5 // pred_check
        _
      $region50: #{tpu_custom_call.1} parent=5 // pred_check_branch
        %400 = sbr.rel (%p397) target = $region52
      $region51: #{tpu_custom_call.1} parent=5 // pred_region
        %s401 = ssub.s32 %s30, 1
        %s402 = sand.u32 %s43, 1
        %s403 = scalar_lea.sflag [#allocation3], %s402
        %s404 = sand.u32 %s43, 1
        %s405 = smul.addr %s404, 64
        %s406 = scalar_lea.vmem [#allocation2], %s405
        // Predicated region
        $region53: #{tpu_custom_call.1} parent=51 // pred_check
          %p407 = pneg %p56
        $region54: #{tpu_custom_call.1} parent=51 // pred_check_branch
          %409 = sbr.rel (%p407) target = $region56
        $region55: #{tpu_custom_call.1} parent=51 // pred_region
          %410 = dma.done %s403, 1024
        $region56: #{tpu_custom_call.1} parent=51 // pred_fallthru
          _
        %s411 = sand.u32 %s35, 1
        %s412 = scalar_lea.sflag [#allocation6], %s411
        %s413 = sand.u32 %s69, 1
        %s414 = smul.addr %s413, 64
        %s415 = scalar_lea.vmem [#allocation5], %s414
        // Predicated region
        $region57: #{tpu_custom_call.1} parent=51 // pred_check
          %p416 = pneg %p82
        $region58: #{tpu_custom_call.1} parent=51 // pred_check_branch
          %418 = sbr.rel (%p416) target = $region60
        $region59: #{tpu_custom_call.1} parent=51 // pred_region
          %419 = dma.done %s412, 1024
        $region60: #{tpu_custom_call.1} parent=51 // pred_fallthru
          _
        // Predicated region
        $region61: #{tpu_custom_call.1} parent=51 // pred_check
          %p420 = pneg %p103
        $region62: #{tpu_custom_call.1} parent=51 // pred_check_branch
          %422 = sbr.rel (%p420) target = $region64
        $region63: #{tpu_custom_call.1} parent=51 // pred_region
          %423 = dma.done [#allocation6], 1024
        $region64: #{tpu_custom_call.1} parent=51 // pred_fallthru
          _
        // Predicated region
        $region65: #{tpu_custom_call.1} parent=51 // pred_check
          %p424 = pneg %p145
        $region66: #{tpu_custom_call.1} parent=51 // pred_check_branch
          %426 = sbr.rel (%p424) target = $region68
        $region67: #{tpu_custom_call.1} parent=51 // pred_region
          %427 = dma.done [#allocation9], 1024
        $region68: #{tpu_custom_call.1} parent=51 // pred_fallthru
          _
        // Predicated region
        $region69: #{tpu_custom_call.1} parent=51 // pred_check
          %p428 = pneg %p187
        $region70: #{tpu_custom_call.1} parent=51 // pred_check_branch
          %430 = sbr.rel (%p428) target = $region72
        $region71: #{tpu_custom_call.1} parent=51 // pred_region
          %431 = dma.done [#allocation9], 1024
        $region72: #{tpu_custom_call.1} parent=51 // pred_fallthru
          _
        %s432 = sand.u32 %s43, 1
        %s433 = scalar_lea.sflag [#allocation3], %s432
        %s434 = sand.u32 %s43, 1
        %s435 = smul.addr %s434, 64
        %s436 = scalar_lea.vmem [#allocation2], %s435
        %p437 = pneg %p56
        %p438 = pneg %p53
        %s439 = sand.u32 %s35, 1
        %s440 = scalar_lea.sflag [#allocation6], %s439
        %s441 = sand.u32 %s69, 1
        %s442 = smul.addr %s441, 64
        %s443 = scalar_lea.vmem [#allocation5], %s442
        %p444 = pneg %p82
        %p445 = pneg %p79
        %p446 = pneg %p103
        %p447 = pneg %p100
        %p448 = pneg %p124
        %p449 = pneg %p121
        %p450 = pneg %p145
        %p451 = pneg %p142
        %p452 = pneg %p166
        %p453 = pneg %p163
        %p454 = pneg %p187
        %p455 = pneg %p184
        %p456 = pneg %p208
        %p457 = pneg %p205
        %p458 = pneg %p234
        %p459 = pneg %p231
        %s460 = sand.u32 %s221, 1
        %s461 = scalar_lea.sflag [#allocation4], %s460
        %s462 = sand.u32 %s221, 1
        %s463 = smul.addr %s462, 128
        %s464 = scalar_lea.vmem [#allocation11], %s463
        %p465 = pneg %p260
        %p466 = pneg %p257
        %s467 = sand.u32 %s35, 1
        %s468 = scalar_lea.sflag [#allocation13], %s467
        %s469 = sand.u32 %s247, 1
        %s470 = smul.addr %s469, 128
        %s471 = scalar_lea.vmem [#allocation12], %s470
        %p472 = pneg %p286
        %p473 = pneg %p283
        %s474 = sand.u32 %s35, 1
        %s475 = scalar_lea.sflag [#allocation13], %s474
        %s476 = sand.u32 %s273, 1
        %s477 = smul.addr %s476, 128
        %s478 = scalar_lea.vmem [#allocation14], %s477
        %s479 = smul.u32 16, %s35
        %s480 = smul.u32 16, %s35
        %s481 = smul.u32 16, %s35
        %s482 = smul.u32 16, %s35
        %s483 = smul.u32 16, %s35
        %v485 = vld [vmem:[%s406] sm:$0xf]
        %v486 = vld [vmem:[%s406 + $0x4] sm:$0xf]
        %v487 = vld [vmem:[%s406 + $0x8] sm:$0xf]
        %v488 = vld [vmem:[%s406 + $0xc] sm:$0xf]
        %v489 = vld [vmem:[%s406 + $0x10] sm:$0xf]
        %v490 = vld [vmem:[%s406 + $0x14] sm:$0xf]
        %v491 = vld [vmem:[%s406 + $0x18] sm:$0xf]
        %v492 = vld [vmem:[%s406 + $0x1c] sm:$0xf]
        %v493 = vld [vmem:[%s406 + $0x20] sm:$0xf]
        %v494 = vld [vmem:[%s406 + $0x24] sm:$0xf]
        %v495 = vld [vmem:[%s406 + $0x28] sm:$0xf]
        %v496 = vld [vmem:[%s406 + $0x2c] sm:$0xf]
        %v497 = vld [vmem:[%s406 + $0x30] sm:$0xf]
        %v498 = vld [vmem:[%s406 + $0x34] sm:$0xf]
        %v499 = vld [vmem:[%s406 + $0x38] sm:$0xf]
        %v500 = vld [vmem:[%s406 + $0x3c] sm:$0xf]
        %v501 = vld [vmem:[#allocation7] sm:$0xf]
        %v502 = vld [vmem:[#allocation7 + $0x4] sm:$0xf]
        %v503 = vld [vmem:[#allocation7 + $0x8] sm:$0xf]
        %v504 = vld [vmem:[#allocation7 + $0xc] sm:$0xf]
        %v505 = vld [vmem:[#allocation7 + $0x10] sm:$0xf]
        %v506 = vld [vmem:[#allocation7 + $0x14] sm:$0xf]
        %v507 = vld [vmem:[#allocation7 + $0x18] sm:$0xf]
        %v508 = vld [vmem:[#allocation7 + $0x1c] sm:$0xf]
        %v509 = vld [vmem:[#allocation7 + $0x20] sm:$0xf]
        %v510 = vld [vmem:[#allocation7 + $0x24] sm:$0xf]
        %v511 = vld [vmem:[#allocation7 + $0x28] sm:$0xf]
        %v512 = vld [vmem:[#allocation7 + $0x2c] sm:$0xf]
        %v513 = vld [vmem:[#allocation7 + $0x30] sm:$0xf]
        %v514 = vld [vmem:[#allocation7 + $0x34] sm:$0xf]
        %v515 = vld [vmem:[#allocation7 + $0x38] sm:$0xf]
        %v516 = vld [vmem:[#allocation7 + $0x3c] sm:$0xf]
        %v517 = vld [vmem:[%s3] sm:$0x1]
        %v519 = vlaneseq
        %v520 = vshrl.u32 %v519, 7
        %v521 = vsub.s32 0, %v520
        %v522 = vrot.slane %v517, %v521
        %v540 = vunpack.c.l.b16 %v485
        %v541 = vunpack.c.l.b16 %v486
        %v542 = vunpack.c.l.b16 %v487
        %v543 = vunpack.c.l.b16 %v488
        %v544 = vunpack.c.l.b16 %v489
        %v545 = vunpack.c.l.b16 %v490
        %v546 = vunpack.c.l.b16 %v491
        %v547 = vunpack.c.l.b16 %v492
        %v548 = vunpack.c.l.b16 %v493
        %v549 = vunpack.c.l.b16 %v494
        %v550 = vunpack.c.l.b16 %v495
        %v551 = vunpack.c.l.b16 %v496
        %v552 = vunpack.c.l.b16 %v497
        %v553 = vunpack.c.l.b16 %v498
        %v554 = vunpack.c.l.b16 %v499
        %v555 = vunpack.c.l.b16 %v500
        %v556 = vpack.c.b16 %v541, %v540
        %v557 = vpack.c.b16 %v543, %v542
        %v558 = vpack.c.b16 %v545, %v544
        %v559 = vpack.c.b16 %v547, %v546
        %v560 = vpack.c.b16 %v549, %v548
        %v561 = vpack.c.b16 %v551, %v550
        %v562 = vpack.c.b16 %v553, %v552
        %v563 = vpack.c.b16 %v555, %v554
        %v588 = vunpack.c.l.b16 %v501
        %v589 = vunpack.c.l.b16 %v502
        %v590 = vunpack.c.l.b16 %v503
        %v591 = vunpack.c.l.b16 %v504
        %v592 = vunpack.c.l.b16 %v505
        %v593 = vunpack.c.l.b16 %v506
        %v594 = vunpack.c.l.b16 %v507
        %v595 = vunpack.c.l.b16 %v508
        %v596 = vunpack.c.l.b16 %v509
        %v597 = vunpack.c.l.b16 %v510
        %v598 = vunpack.c.l.b16 %v511
        %v599 = vunpack.c.l.b16 %v512
        %v600 = vunpack.c.l.b16 %v513
        %v601 = vunpack.c.l.b16 %v514
        %v602 = vunpack.c.l.b16 %v515
        %v603 = vunpack.c.l.b16 %v516
        %v604 = vpack.c.b16 %v589, %v588
        %v605 = vpack.c.b16 %v591, %v590
        %v606 = vpack.c.b16 %v593, %v592
        %v607 = vpack.c.b16 %v595, %v594
        %v608 = vpack.c.b16 %v597, %v596
        %v609 = vpack.c.b16 %v599, %v598
        %v610 = vpack.c.b16 %v601, %v600
        %v611 = vpack.c.b16 %v603, %v602
        %620 = vmatprep.subr.bf16.mxu0 0
        %621 = vmatpush1.bf16.msra.mxu0 %v604
        %622 = vmatprep.subr.bf16.mxu0 0
        %623 = vmatpush1.bf16.msra.mxu0 %v605
        %624 = vmatprep.subr.bf16.mxu0 0
        %625 = vmatpush1.bf16.msra.mxu0 %v606
        %626 = vmatprep.subr.bf16.mxu0 0
        %627 = vmatpush1.bf16.msra.mxu0 %v607
        %628 = vmatprep.subr.bf16.mxu0 0
        %629 = vmatpush1.bf16.msra.mxu0 %v608
        %630 = vmatprep.subr.bf16.mxu0 0
        %631 = vmatpush1.bf16.msra.mxu0 %v609
        %632 = vmatprep.subr.bf16.mxu0 0
        %633 = vmatpush1.bf16.msra.mxu0 %v610
        %634 = vmatprep.subr.bf16.mxu0 0
        %635 = vmatpush1.bf16.msra.mxu0 %v611
        %636 = vmatprep.subr.bf16.mxu0 0
        %637 = vmatpush1.bf16.msra.mxu0 0
        %638 = vmatprep.subr.bf16.mxu0 0
        %639 = vmatpush1.bf16.msra.mxu0 0
        %640 = vmatprep.subr.bf16.mxu0 0
        %641 = vmatpush1.bf16.msra.mxu0 0
        %642 = vmatprep.subr.bf16.mxu0 0
        %643 = vmatpush1.bf16.msra.mxu0 0
        %644 = vmatprep.subr.bf16.mxu0 0
        %645 = vmatpush1.bf16.msra.mxu0 0
        %646 = vmatprep.subr.bf16.mxu0 0
        %647 = vmatpush1.bf16.msra.mxu0 0
        %648 = vmatprep.subr.bf16.mxu0 0
        %649 = vmatpush1.bf16.msra.mxu0 0
        %650 = vmatprep.subr.bf16.mxu0 0
        %651 = vmatpush1.bf16.msra.mxu0 0
        %652 = vmatprep.mubr.bf16.mxu0 0
        %653 = vmatmul.mubr.bf16.gmra.mrb[0].mxu0 %v556
        %v654 = vpop.f32.mrb[0].mxu0
        %v655 = vadd.f32 %v522, %v654
        %v656 = vpop.f32.mrb[0].mxu0
        %v657 = vpop.f32.mrb[0].mxu0
        %v658 = vadd.f32 %v522, %v657
        %v659 = vpop.f32.mrb[0].mxu0
        %660 = vmatprep.mubr.bf16.mxu0 0
        %661 = vmatmul.mubr.bf16.gmra.mrb[0].mxu0 %v557
        %v662 = vpop.f32.mrb[0].mxu0
        %v663 = vadd.f32 %v522, %v662
        %v664 = vpop.f32.mrb[0].mxu0
        %v665 = vpop.f32.mrb[0].mxu0
        %v666 = vadd.f32 %v522, %v665
        %v667 = vpop.f32.mrb[0].mxu0
        %668 = vmatprep.mubr.bf16.mxu0 0
        %669 = vmatmul.mubr.bf16.gmra.mrb[0].mxu0 %v558
        %v670 = vpop.f32.mrb[0].mxu0
        %v671 = vadd.f32 %v522, %v670
        %v672 = vpop.f32.mrb[0].mxu0
        %v673 = vpop.f32.mrb[0].mxu0
        %v674 = vadd.f32 %v522, %v673
        %v675 = vpop.f32.mrb[0].mxu0
        %676 = vmatprep.mubr.bf16.mxu0 0
        %677 = vmatmul.mubr.bf16.gmra.mrb[0].mxu0 %v559
        %v678 = vpop.f32.mrb[0].mxu0
        %v679 = vadd.f32 %v522, %v678
        %v680 = vpop.f32.mrb[0].mxu0
        %v681 = vpop.f32.mrb[0].mxu0
        %v682 = vadd.f32 %v522, %v681
        %v683 = vpop.f32.mrb[0].mxu0
        %684 = vmatprep.mubr.bf16.mxu0 0
        %685 = vmatmul.mubr.bf16.gmra.mrb[0].mxu0 %v560
        %v686 = vpop.f32.mrb[0].mxu0
        %v687 = vadd.f32 %v522, %v686
        %v688 = vpop.f32.mrb[0].mxu0
        %v689 = vpop.f32.mrb[0].mxu0
        %v690 = vadd.f32 %v522, %v689
        %v691 = vpop.f32.mrb[0].mxu0
        %692 = vmatprep.mubr.bf16.mxu0 0
        %693 = vmatmul.mubr.bf16.gmra.mrb[0].mxu0 %v561
        %v694 = vpop.f32.mrb[0].mxu0
        %v695 = vadd.f32 %v522, %v694
        %v696 = vpop.f32.mrb[0].mxu0
        %v697 = vpop.f32.mrb[0].mxu0
        %v698 = vadd.f32 %v522, %v697
        %v699 = vpop.f32.mrb[0].mxu0
        %700 = vmatprep.mubr.bf16.mxu0 0
        %701 = vmatmul.mubr.bf16.gmra.mrb[0].mxu0 %v562
        %v702 = vpop.f32.mrb[0].mxu0
        %v703 = vadd.f32 %v522, %v702
        %v704 = vpop.f32.mrb[0].mxu0
        %v705 = vpop.f32.mrb[0].mxu0
        %v706 = vadd.f32 %v522, %v705
        %v707 = vpop.f32.mrb[0].mxu0
        %708 = vmatprep.mubr.bf16.mxu0 0
        %709 = vmatmul.mubr.bf16.gmra.mrb[0].mxu0 %v563
        %v710 = vpop.f32.mrb[0].mxu0
        %v711 = vadd.f32 %v522, %v710
        %v712 = vpop.f32.mrb[0].mxu0
        %v713 = vpop.f32.mrb[0].mxu0
        %v714 = vadd.f32 %v522, %v713
        %v715 = vpop.f32.mrb[0].mxu0
        %716 = vdwg.mxu0
        %v717 = vld [vmem:[%s415] sm:$0xf]
        %v718 = vld [vmem:[%s415 + $0x4] sm:$0xf]
        %v719 = vld [vmem:[%s415 + $0x8] sm:$0xf]
        %v720 = vld [vmem:[%s415 + $0xc] sm:$0xf]
        %v721 = vld [vmem:[%s415 + $0x10] sm:$0xf]
        %v722 = vld [vmem:[%s415 + $0x14] sm:$0xf]
        %v723 = vld [vmem:[%s415 + $0x18] sm:$0xf]
        %v724 = vld [vmem:[%s415 + $0x1c] sm:$0xf]
        %v725 = vld [vmem:[%s415 + $0x20] sm:$0xf]
        %v726 = vld [vmem:[%s415 + $0x24] sm:$0xf]
        %v727 = vld [vmem:[%s415 + $0x28] sm:$0xf]
        %v728 = vld [vmem:[%s415 + $0x2c] sm:$0xf]
        %v729 = vld [vmem:[%s415 + $0x30] sm:$0xf]
        %v730 = vld [vmem:[%s415 + $0x34] sm:$0xf]
        %v731 = vld [vmem:[%s415 + $0x38] sm:$0xf]
        %v732 = vld [vmem:[%s415 + $0x3c] sm:$0xf]
        %v733 = vld [vmem:[#allocation8] sm:$0xf]
        %v734 = vld [vmem:[#allocation8 + $0x4] sm:$0xf]
        %v735 = vld [vmem:[#allocation8 + $0x8] sm:$0xf]
        %v736 = vld [vmem:[#allocation8 + $0xc] sm:$0xf]
        %v737 = vld [vmem:[#allocation8 + $0x10] sm:$0xf]
        %v738 = vld [vmem:[#allocation8 + $0x14] sm:$0xf]
        %v739 = vld [vmem:[#allocation8 + $0x18] sm:$0xf]
        %v740 = vld [vmem:[#allocation8 + $0x1c] sm:$0xf]
        %v741 = vld [vmem:[#allocation8 + $0x20] sm:$0xf]
        %v742 = vld [vmem:[#allocation8 + $0x24] sm:$0xf]
        %v743 = vld [vmem:[#allocation8 + $0x28] sm:$0xf]
        %v744 = vld [vmem:[#allocation8 + $0x2c] sm:$0xf]
        %v745 = vld [vmem:[#allocation8 + $0x30] sm:$0xf]
        %v746 = vld [vmem:[#allocation8 + $0x34] sm:$0xf]
        %v747 = vld [vmem:[#allocation8 + $0x38] sm:$0xf]
        %v748 = vld [vmem:[#allocation8 + $0x3c] sm:$0xf]
        %v749 = vld [vmem:[%s5] sm:$0x1]
        %v751 = vlaneseq
        %v752 = vshrl.u32 %v751, 7
        %v753 = vsub.s32 0, %v752
        %v754 = vrot.slane %v749, %v753
        %v772 = vunpack.c.l.b16 %v717
        %v773 = vunpack.c.l.b16 %v718
        %v774 = vunpack.c.l.b16 %v719
        %v775 = vunpack.c.l.b16 %v720
        %v776 = vunpack.c.l.b16 %v721
        %v777 = vunpack.c.l.b16 %v722
        %v778 = vunpack.c.l.b16 %v723
        %v779 = vunpack.c.l.b16 %v724
        %v780 = vunpack.c.l.b16 %v725
        %v781 = vunpack.c.l.b16 %v726
        %v782 = vunpack.c.l.b16 %v727
        %v783 = vunpack.c.l.b16 %v728
        %v784 = vunpack.c.l.b16 %v729
        %v785 = vunpack.c.l.b16 %v730
        %v786 = vunpack.c.l.b16 %v731
        %v787 = vunpack.c.l.b16 %v732
        %v788 = vpack.c.b16 %v773, %v772
        %v789 = vpack.c.b16 %v775, %v774
        %v790 = vpack.c.b16 %v777, %v776
        %v791 = vpack.c.b16 %v779, %v778
        %v792 = vpack.c.b16 %v781, %v780
        %v793 = vpack.c.b16 %v783, %v782
        %v794 = vpack.c.b16 %v785, %v784
        %v795 = vpack.c.b16 %v787, %v786
        %v820 = vunpack.c.l.b16 %v733
        %v821 = vunpack.c.l.b16 %v734
        %v822 = vunpack.c.l.b16 %v735
        %v823 = vunpack.c.l.b16 %v736
        %v824 = vunpack.c.l.b16 %v737
        %v825 = vunpack.c.l.b16 %v738
        %v826 = vunpack.c.l.b16 %v739
        %v827 = vunpack.c.l.b16 %v740
        %v828 = vunpack.c.l.b16 %v741
        %v829 = vunpack.c.l.b16 %v742
        %v830 = vunpack.c.l.b16 %v743
        %v831 = vunpack.c.l.b16 %v744
        %v832 = vunpack.c.l.b16 %v745
        %v833 = vunpack.c.l.b16 %v746
        %v834 = vunpack.c.l.b16 %v747
        %v835 = vunpack.c.l.b16 %v748
        %v836 = vpack.c.b16 %v821, %v820
        %v837 = vpack.c.b16 %v823, %v822
        %v838 = vpack.c.b16 %v825, %v824
        %v839 = vpack.c.b16 %v827, %v826
        %v840 = vpack.c.b16 %v829, %v828
        %v841 = vpack.c.b16 %v831, %v830
        %v842 = vpack.c.b16 %v833, %v832
        %v843 = vpack.c.b16 %v835, %v834
        %852 = vmatprep.subr.bf16.mxu0 0
        %853 = vmatpush1.bf16.msra.mxu0 %v836
        %854 = vmatprep.subr.bf16.mxu0 0
        %855 = vmatpush1.bf16.msra.mxu0 %v837
        %856 = vmatprep.subr.bf16.mxu0 0
        %857 = vmatpush1.bf16.msra.mxu0 %v838
        %858 = vmatprep.subr.bf16.mxu0 0
        %859 = vmatpush1.bf16.msra.mxu0 %v839
        %860 = vmatprep.subr.bf16.mxu0 0
        %861 = vmatpush1.bf16.msra.mxu0 %v840
        %862 = vmatprep.subr.bf16.mxu0 0
        %863 = vmatpush1.bf16.msra.mxu0 %v841
        %864 = vmatprep.subr.bf16.mxu0 0
        %865 = vmatpush1.bf16.msra.mxu0 %v842
        %866 = vmatprep.subr.bf16.mxu0 0
        %867 = vmatpush1.bf16.msra.mxu0 %v843
        %868 = vmatprep.subr.bf16.mxu0 0
        %869 = vmatpush1.bf16.msra.mxu0 0
        %870 = vmatprep.subr.bf16.mxu0 0
        %871 = vmatpush1.bf16.msra.mxu0 0
        %872 = vmatprep.subr.bf16.mxu0 0
        %873 = vmatpush1.bf16.msra.mxu0 0
        %874 = vmatprep.subr.bf16.mxu0 0
        %875 = vmatpush1.bf16.msra.mxu0 0
        %876 = vmatprep.subr.bf16.mxu0 0
        %877 = vmatpush1.bf16.msra.mxu0 0
        %878 = vmatprep.subr.bf16.mxu0 0
        %879 = vmatpush1.bf16.msra.mxu0 0
        %880 = vmatprep.subr.bf16.mxu0 0
        %881 = vmatpush1.bf16.msra.mxu0 0
        %882 = vmatprep.subr.bf16.mxu0 0
        %883 = vmatpush1.bf16.msra.mxu0 0
        %884 = vmatprep.mubr.bf16.mxu0 0
        %885 = vmatmul.mubr.bf16.gmra.mrb[0].mxu0 %v788
        %v886 = vpop.f32.mrb[0].mxu0
        %v887 = vadd.f32 %v754, %v886
        %v888 = vpop.f32.mrb[0].mxu0
        %v889 = vpop.f32.mrb[0].mxu0
        %v890 = vadd.f32 %v754, %v889
        %v891 = vpop.f32.mrb[0].mxu0
        %892 = vmatprep.mubr.bf16.mxu0 0
        %893 = vmatmul.mubr.bf16.gmra.mrb[0].mxu0 %v789
        %v894 = vpop.f32.mrb[0].mxu0
        %v895 = vadd.f32 %v754, %v894
        %v896 = vpop.f32.mrb[0].mxu0
        %v897 = vpop.f32.mrb[0].mxu0
        %v898 = vadd.f32 %v754, %v897
        %v899 = vpop.f32.mrb[0].mxu0
        %900 = vmatprep.mubr.bf16.mxu0 0
        %901 = vmatmul.mubr.bf16.gmra.mrb[0].mxu0 %v790
        %v902 = vpop.f32.mrb[0].mxu0
        %v903 = vadd.f32 %v754, %v902
        %v904 = vpop.f32.mrb[0].mxu0
        %v905 = vpop.f32.mrb[0].mxu0
        %v906 = vadd.f32 %v754, %v905
        %v907 = vpop.f32.mrb[0].mxu0
        %908 = vmatprep.mubr.bf16.mxu0 0
        %909 = vmatmul.mubr.bf16.gmra.mrb[0].mxu0 %v791
        %v910 = vpop.f32.mrb[0].mxu0
        %v911 = vadd.f32 %v754, %v910
        %v912 = vpop.f32.mrb[0].mxu0
        %v913 = vpop.f32.mrb[0].mxu0
        %v914 = vadd.f32 %v754, %v913
        %v915 = vpop.f32.mrb[0].mxu0
        %916 = vmatprep.mubr.bf16.mxu0 0
        %917 = vmatmul.mubr.bf16.gmra.mrb[0].mxu0 %v792
        %v918 = vpop.f32.mrb[0].mxu0
        %v919 = vadd.f32 %v754, %v918
        %v920 = vpop.f32.mrb[0].mxu0
        %v921 = vpop.f32.mrb[0].mxu0
        %v922 = vadd.f32 %v754, %v921
        %v923 = vpop.f32.mrb[0].mxu0
        %924 = vmatprep.mubr.bf16.mxu0 0
        %925 = vmatmul.mubr.bf16.gmra.mrb[0].mxu0 %v793
        %v926 = vpop.f32.mrb[0].mxu0
        %v927 = vadd.f32 %v754, %v926
        %v928 = vpop.f32.mrb[0].mxu0
        %v929 = vpop.f32.mrb[0].mxu0
        %v930 = vadd.f32 %v754, %v929
        %v931 = vpop.f32.mrb[0].mxu0
        %932 = vmatprep.mubr.bf16.mxu0 0
        %933 = vmatmul.mubr.bf16.gmra.mrb[0].mxu0 %v794
        %v934 = vpop.f32.mrb[0].mxu0
        %v935 = vadd.f32 %v754, %v934
        %v936 = vpop.f32.mrb[0].mxu0
        %v937 = vpop.f32.mrb[0].mxu0
        %v938 = vadd.f32 %v754, %v937
        %v939 = vpop.f32.mrb[0].mxu0
        %940 = vmatprep.mubr.bf16.mxu0 0
        %941 = vmatmul.mubr.bf16.gmra.mrb[0].mxu0 %v795
        %v942 = vpop.f32.mrb[0].mxu0
        %v943 = vadd.f32 %v754, %v942
        %v944 = vpop.f32.mrb[0].mxu0
        %v945 = vpop.f32.mrb[0].mxu0
        %v946 = vadd.f32 %v754, %v945
        %v947 = vpop.f32.mrb[0].mxu0
        %948 = vdwg.mxu0
        %v949 = vpack.c.bf16 %v890, %v887
        %v950 = vpack.c.bf16 %v898, %v895
        %v951 = vpack.c.bf16 %v906, %v903
        %v952 = vpack.c.bf16 %v914, %v911
        %v953 = vpack.c.bf16 %v922, %v919
        %v954 = vpack.c.bf16 %v930, %v927
        %v955 = vpack.c.bf16 %v938, %v935
        %v956 = vpack.c.bf16 %v946, %v943
        %v957 = vld [vmem:[#allocation10] sm:$0xf]
        %v958 = vld [vmem:[#allocation10 + $0x4] sm:$0xf]
        %v959 = vld [vmem:[#allocation10 + $0x8] sm:$0xf]
        %v960 = vld [vmem:[#allocation10 + $0xc] sm:$0xf]
        %v961 = vld [vmem:[#allocation10 + $0x10] sm:$0xf]
        %v962 = vld [vmem:[#allocation10 + $0x14] sm:$0xf]
        %v963 = vld [vmem:[#allocation10 + $0x18] sm:$0xf]
        %v964 = vld [vmem:[#allocation10 + $0x1c] sm:$0xf]
        %v965 = vld [vmem:[#allocation10 + $0x20] sm:$0xf]
        %v966 = vld [vmem:[#allocation10 + $0x24] sm:$0xf]
        %v967 = vld [vmem:[#allocation10 + $0x28] sm:$0xf]
        %v968 = vld [vmem:[#allocation10 + $0x2c] sm:$0xf]
        %v969 = vld [vmem:[#allocation10 + $0x30] sm:$0xf]
        %v970 = vld [vmem:[#allocation10 + $0x34] sm:$0xf]
        %v971 = vld [vmem:[#allocation10 + $0x38] sm:$0xf]
        %v972 = vld [vmem:[#allocation10 + $0x3c] sm:$0xf]
        %v973 = vld [vmem:[%s7] sm:$0x1]
        %v975 = vlaneseq
        %v976 = vshrl.u32 %v975, 7
        %v977 = vsub.s32 0, %v976
        %v978 = vrot.slane %v973, %v977
        %v996 = vunpack.c.l.b16 %v957
        %v997 = vunpack.c.l.b16 %v958
        %v998 = vunpack.c.l.b16 %v959
        %v999 = vunpack.c.l.b16 %v960
        %v1000 = vunpack.c.l.b16 %v961
        %v1001 = vunpack.c.l.b16 %v962
        %v1002 = vunpack.c.l.b16 %v963
        %v1003 = vunpack.c.l.b16 %v964
        %v1004 = vunpack.c.l.b16 %v965
        %v1005 = vunpack.c.l.b16 %v966
        %v1006 = vunpack.c.l.b16 %v967
        %v1007 = vunpack.c.l.b16 %v968
        %v1008 = vunpack.c.l.b16 %v969
        %v1009 = vunpack.c.l.b16 %v970
        %v1010 = vunpack.c.l.b16 %v971
        %v1011 = vunpack.c.l.b16 %v972
        %v1012 = vpack.c.b16 %v997, %v996
        %v1013 = vpack.c.b16 %v999, %v998
        %v1014 = vpack.c.b16 %v1001, %v1000
        %v1015 = vpack.c.b16 %v1003, %v1002
        %v1016 = vpack.c.b16 %v1005, %v1004
        %v1017 = vpack.c.b16 %v1007, %v1006
        %v1018 = vpack.c.b16 %v1009, %v1008
        %v1019 = vpack.c.b16 %v1011, %v1010
        %1028 = vmatprep.subr.bf16.mxu0 0
        %1029 = vmatpush1.bf16.msra.mxu0 %v1012
        %1030 = vmatprep.subr.bf16.mxu0 0
        %1031 = vmatpush1.bf16.msra.mxu0 %v1013
        %1032 = vmatprep.subr.bf16.mxu0 0
        %1033 = vmatpush1.bf16.msra.mxu0 %v1014
        %1034 = vmatprep.subr.bf16.mxu0 0
        %1035 = vmatpush1.bf16.msra.mxu0 %v1015
        %1036 = vmatprep.subr.bf16.mxu0 0
        %1037 = vmatpush1.bf16.msra.mxu0 %v1016
        %1038 = vmatprep.subr.bf16.mxu0 0
        %1039 = vmatpush1.bf16.msra.mxu0 %v1017
        %1040 = vmatprep.subr.bf16.mxu0 0
        %1041 = vmatpush1.bf16.msra.mxu0 %v1018
        %1042 = vmatprep.subr.bf16.mxu0 0
        %1043 = vmatpush1.bf16.msra.mxu0 %v1019
        %1044 = vmatprep.subr.bf16.mxu0 0
        %1045 = vmatpush1.bf16.msra.mxu0 0
        %1046 = vmatprep.subr.bf16.mxu0 0
        %1047 = vmatpush1.bf16.msra.mxu0 0
        %1048 = vmatprep.subr.bf16.mxu0 0
        %1049 = vmatpush1.bf16.msra.mxu0 0
        %1050 = vmatprep.subr.bf16.mxu0 0
        %1051 = vmatpush1.bf16.msra.mxu0 0
        %1052 = vmatprep.subr.bf16.mxu0 0
        %1053 = vmatpush1.bf16.msra.mxu0 0
        %1054 = vmatprep.subr.bf16.mxu0 0
        %1055 = vmatpush1.bf16.msra.mxu0 0
        %1056 = vmatprep.subr.bf16.mxu0 0
        %1057 = vmatpush1.bf16.msra.mxu0 0
        %1058 = vmatprep.subr.bf16.mxu0 0
        %1059 = vmatpush1.bf16.msra.mxu0 0
        %1060 = vmatprep.mubr.bf16.mxu0 0
        %1061 = vmatmul.mubr.bf16.gmra.mrb[0].mxu0 %v949
        %v1062 = vpop.f32.mrb[0].mxu0
        %v1063 = vadd.f32 %v978, %v1062
        %v1064 = vpop.f32.mrb[0].mxu0
        %v1065 = vpop.f32.mrb[0].mxu0
        %v1066 = vadd.f32 %v978, %v1065
        %v1067 = vpop.f32.mrb[0].mxu0
        %1068 = vmatprep.mubr.bf16.mxu0 0
        %1069 = vmatmul.mubr.bf16.gmra.mrb[0].mxu0 %v950
        %v1070 = vpop.f32.mrb[0].mxu0
        %v1071 = vadd.f32 %v978, %v1070
        %v1072 = vpop.f32.mrb[0].mxu0
        %v1073 = vpop.f32.mrb[0].mxu0
        %v1074 = vadd.f32 %v978, %v1073
        %v1075 = vpop.f32.mrb[0].mxu0
        %1076 = vmatprep.mubr.bf16.mxu0 0
        %1077 = vmatmul.mubr.bf16.gmra.mrb[0].mxu0 %v951
        %v1078 = vpop.f32.mrb[0].mxu0
        %v1079 = vadd.f32 %v978, %v1078
        %v1080 = vpop.f32.mrb[0].mxu0
        %v1081 = vpop.f32.mrb[0].mxu0
        %v1082 = vadd.f32 %v978, %v1081
        %v1083 = vpop.f32.mrb[0].mxu0
        %1084 = vmatprep.mubr.bf16.mxu0 0
        %1085 = vmatmul.mubr.bf16.gmra.mrb[0].mxu0 %v952
        %v1086 = vpop.f32.mrb[0].mxu0
        %v1087 = vadd.f32 %v978, %v1086
        %v1088 = vpop.f32.mrb[0].mxu0
        %v1089 = vpop.f32.mrb[0].mxu0
        %v1090 = vadd.f32 %v978, %v1089
        %v1091 = vpop.f32.mrb[0].mxu0
        %1092 = vmatprep.mubr.bf16.mxu0 0
        %1093 = vmatmul.mubr.bf16.gmra.mrb[0].mxu0 %v953
        %v1094 = vpop.f32.mrb[0].mxu0
        %v1095 = vadd.f32 %v978, %v1094
        %v1096 = vpop.f32.mrb[0].mxu0
        %v1097 = vpop.f32.mrb[0].mxu0
        %v1098 = vadd.f32 %v978, %v1097
        %v1099 = vpop.f32.mrb[0].mxu0
        %1100 = vmatprep.mubr.bf16.mxu0 0
        %1101 = vmatmul.mubr.bf16.gmra.mrb[0].mxu0 %v954
        %v1102 = vpop.f32.mrb[0].mxu0
        %v1103 = vadd.f32 %v978, %v1102
        %v1104 = vpop.f32.mrb[0].mxu0
        %v1105 = vpop.f32.mrb[0].mxu0
        %v1106 = vadd.f32 %v978, %v1105
        %v1107 = vpop.f32.mrb[0].mxu0
        %1108 = vmatprep.mubr.bf16.mxu0 0
        %1109 = vmatmul.mubr.bf16.gmra.mrb[0].mxu0 %v955
        %v1110 = vpop.f32.mrb[0].mxu0
        %v1111 = vadd.f32 %v978, %v1110
        %v1112 = vpop.f32.mrb[0].mxu0
        %v1113 = vpop.f32.mrb[0].mxu0
        %v1114 = vadd.f32 %v978, %v1113
        %v1115 = vpop.f32.mrb[0].mxu0
        %1116 = vmatprep.mubr.bf16.mxu0 0
        %1117 = vmatmul.mubr.bf16.gmra.mrb[0].mxu0 %v956
        %v1118 = vpop.f32.mrb[0].mxu0
        %v1119 = vadd.f32 %v978, %v1118
        %v1120 = vpop.f32.mrb[0].mxu0
        %v1121 = vpop.f32.mrb[0].mxu0
        %v1122 = vadd.f32 %v978, %v1121
        %v1123 = vpop.f32.mrb[0].mxu0
        %1124 = vdwg.mxu0
        %1125 = vst [vmem:[%s464] sm:$0xff] %v655
        %1126 = vst [vmem:[%s464 + $0x8] sm:$0xff] %v658
        %1127 = vst [vmem:[%s464 + $0x10] sm:$0xff] %v663
        %1128 = vst [vmem:[%s464 + $0x18] sm:$0xff] %v666
        %1129 = vst [vmem:[%s464 + $0x20] sm:$0xff] %v671
        %1130 = vst [vmem:[%s464 + $0x28] sm:$0xff] %v674
        %1131 = vst [vmem:[%s464 + $0x30] sm:$0xff] %v679
        %1132 = vst [vmem:[%s464 + $0x38] sm:$0xff] %v682
        %1133 = vst [vmem:[%s464 + $0x40] sm:$0xff] %v687
        %1134 = vst [vmem:[%s464 + $0x48] sm:$0xff] %v690
        %1135 = vst [vmem:[%s464 + $0x50] sm:$0xff] %v695
        %1136 = vst [vmem:[%s464 + $0x58] sm:$0xff] %v698
        %1137 = vst [vmem:[%s464 + $0x60] sm:$0xff] %v703
        %1138 = vst [vmem:[%s464 + $0x68] sm:$0xff] %v706
        %1139 = vst [vmem:[%s464 + $0x70] sm:$0xff] %v711
        %1140 = vst [vmem:[%s464 + $0x78] sm:$0xff] %v714
        %1141 = vst [vmem:[%s471] sm:$0xff] %v887
        %1142 = vst [vmem:[%s471 + $0x8] sm:$0xff] %v890
        %1143 = vst [vmem:[%s471 + $0x10] sm:$0xff] %v895
        %1144 = vst [vmem:[%s471 + $0x18] sm:$0xff] %v898
        %1145 = vst [vmem:[%s471 + $0x20] sm:$0xff] %v903
        %1146 = vst [vmem:[%s471 + $0x28] sm:$0xff] %v906
        %1147 = vst [vmem:[%s471 + $0x30] sm:$0xff] %v911
        %1148 = vst [vmem:[%s471 + $0x38] sm:$0xff] %v914
        %1149 = vst [vmem:[%s471 + $0x40] sm:$0xff] %v919
        %1150 = vst [vmem:[%s471 + $0x48] sm:$0xff] %v922
        %1151 = vst [vmem:[%s471 + $0x50] sm:$0xff] %v927
        %1152 = vst [vmem:[%s471 + $0x58] sm:$0xff] %v930
        %1153 = vst [vmem:[%s471 + $0x60] sm:$0xff] %v935
        %1154 = vst [vmem:[%s471 + $0x68] sm:$0xff] %v938
        %1155 = vst [vmem:[%s471 + $0x70] sm:$0xff] %v943
        %1156 = vst [vmem:[%s471 + $0x78] sm:$0xff] %v946
        %1157 = vst [vmem:[%s478] sm:$0xff] %v1063
        %1158 = vst [vmem:[%s478 + $0x8] sm:$0xff] %v1066
        %1159 = vst [vmem:[%s478 + $0x10] sm:$0xff] %v1071
        %1160 = vst [vmem:[%s478 + $0x18] sm:$0xff] %v1074
        %1161 = vst [vmem:[%s478 + $0x20] sm:$0xff] %v1079
        %1162 = vst [vmem:[%s478 + $0x28] sm:$0xff] %v1082
        %1163 = vst [vmem:[%s478 + $0x30] sm:$0xff] %v1087
        %1164 = vst [vmem:[%s478 + $0x38] sm:$0xff] %v1090
        %1165 = vst [vmem:[%s478 + $0x40] sm:$0xff] %v1095
        %1166 = vst [vmem:[%s478 + $0x48] sm:$0xff] %v1098
        %1167 = vst [vmem:[%s478 + $0x50] sm:$0xff] %v1103
        %1168 = vst [vmem:[%s478 + $0x58] sm:$0xff] %v1106
        %1169 = vst [vmem:[%s478 + $0x60] sm:$0xff] %v1111
        %1170 = vst [vmem:[%s478 + $0x68] sm:$0xff] %v1114
        %1171 = vst [vmem:[%s478 + $0x70] sm:$0xff] %v1119
        %1172 = vst [vmem:[%s478 + $0x78] sm:$0xff] %v1122
        %s1173 = sand.u32 %s221, 1
        %s1174 = scalar_lea.sflag [#allocation4], %s1173
        %s1175 = sand.u32 %s221, 1
        %s1176 = smul.addr %s1175, 128
        %s1177 = scalar_lea.vmem [#allocation11], %s1176
        %s1178 = sand.u32 %s35, 1
        %s1179 = scalar_lea.sflag [#allocation13], %s1178
        %s1180 = sand.u32 %s247, 1
        %s1181 = smul.addr %s1180, 128
        %s1182 = scalar_lea.vmem [#allocation12], %s1181
        %s1183 = sand.u32 %s35, 1
        %s1184 = scalar_lea.sflag [#allocation13], %s1183
        %s1185 = sand.u32 %s273, 1
        %s1186 = smul.addr %s1185, 128
        %s1187 = scalar_lea.vmem [#allocation14], %s1186
        // Predicated region
        $region73: #{tpu_custom_call.1} parent=51 // pred_check
          %p1188 = pneg %p231
        $region74: #{tpu_custom_call.1} parent=51 // pred_check_branch
          %1190 = sbr.rel (%p1188) target = $region76
        $region75: #{tpu_custom_call.1} parent=51 // pred_region
          %s1191 = smul.u32 16, %s35
          %s1193 = ssub.s32 2048, 2048
          %1194 = vsyncadd %s1174, %s1193
          %s1195 = smul.addr %s1191, 128
          %s1196 = scalar_lea.hbm %s8, %s1195
          %s1197 = sshll.u32 %s1177, 4
          %s1198 = int_to_ptr.vmem [resolvable:$true] %s1197
          %1203 = dma.vmem_to_hbm [thread:$0]  %s1198, 2048, %s1196, %s1174, 128, 128, 8
        $region76: #{tpu_custom_call.1} parent=51 // pred_fallthru
          _
        // Predicated region
        $region77: #{tpu_custom_call.1} parent=51 // pred_check
          %p1204 = pneg %p257
        $region78: #{tpu_custom_call.1} parent=51 // pred_check_branch
          %1206 = sbr.rel (%p1204) target = $region80
        $region79: #{tpu_custom_call.1} parent=51 // pred_region
          %s1207 = smul.u32 16, %s35
          %s1209 = ssub.s32 2048, 2048
          %1210 = vsyncadd %s1179, %s1209
          %s1211 = smul.addr %s1207, 128
          %s1212 = scalar_lea.hbm %s9, %s1211
          %s1213 = sshll.u32 %s1182, 4
          %s1214 = int_to_ptr.vmem [resolvable:$true] %s1213
          %1219 = dma.vmem_to_hbm [thread:$0]  %s1214, 2048, %s1212, %s1179, 128, 128, 8
        $region80: #{tpu_custom_call.1} parent=51 // pred_fallthru
          _
        // Predicated region
        $region81: #{tpu_custom_call.1} parent=51 // pred_check
          %p1220 = pneg %p283
        $region82: #{tpu_custom_call.1} parent=51 // pred_check_branch
          %1222 = sbr.rel (%p1220) target = $region84
        $region83: #{tpu_custom_call.1} parent=51 // pred_region
          %s1223 = smul.u32 16, %s35
          %s1225 = ssub.s32 2048, 2048
          %1226 = vsyncadd %s1184, %s1225
          %s1227 = smul.addr %s1223, 128
          %s1228 = scalar_lea.hbm %s10, %s1227
          %s1229 = sshll.u32 %s1187, 4
          %s1230 = int_to_ptr.vmem [resolvable:$true] %s1229
          %1235 = dma.vmem_to_hbm [thread:$0]  %s1230, 2048, %s1228, %s1184, 128, 128, 8
        $region84: #{tpu_custom_call.1} parent=51 // pred_fallthru
          _
      $region52: #{tpu_custom_call.1} parent=5 // pred_fallthru
        _
      %p1236 = scmp.le.s32.totalorder 2, %s30
      // Predicated region
      $region85: #{tpu_custom_call.1} parent=5 // pred_check
        %p1237 = pneg %p1236
      $region86: #{tpu_custom_call.1} parent=5 // pred_check_branch
        %1239 = sbr.rel (%p1237) target = $region88
      $region87: #{tpu_custom_call.1} parent=5 // pred_region
        %s1240 = ssub.s32 %s30, 2
        // Predicated region
        $region89: #{tpu_custom_call.1} parent=87 // pred_check
          %p1241 = pneg %p237
        $region90: #{tpu_custom_call.1} parent=87 // pred_check_branch
          %1243 = sbr.rel (%p1241) target = $region92
        $region91: #{tpu_custom_call.1} parent=87 // pred_region
          %s1244 = sand.u32 %s222, 1
          %s1245 = scalar_lea.sflag [#allocation4], %s1244
          %s1246 = sand.u32 %s222, 1
          %s1247 = smul.addr %s1246, 128
          %s1248 = scalar_lea.vmem [#allocation11], %s1247
          %1249 = dma.done %s1245, 2048
        $region92: #{tpu_custom_call.1} parent=87 // pred_fallthru
          _
        // Predicated region
        $region93: #{tpu_custom_call.1} parent=87 // pred_check
          %p1250 = pneg %p263
        $region94: #{tpu_custom_call.1} parent=87 // pred_check_branch
          %1252 = sbr.rel (%p1250) target = $region96
        $region95: #{tpu_custom_call.1} parent=87 // pred_region
          %s1253 = sand.u32 %s36, 1
          %s1254 = scalar_lea.sflag [#allocation13], %s1253
          %s1255 = sand.u32 %s248, 1
          %s1256 = smul.addr %s1255, 128
          %s1257 = scalar_lea.vmem [#allocation12], %s1256
          %1258 = dma.done %s1254, 2048
        $region96: #{tpu_custom_call.1} parent=87 // pred_fallthru
          _
        // Predicated region
        $region97: #{tpu_custom_call.1} parent=87 // pred_check
          %p1259 = pneg %p289
        $region98: #{tpu_custom_call.1} parent=87 // pred_check_branch
          %1261 = sbr.rel (%p1259) target = $region100
        $region99: #{tpu_custom_call.1} parent=87 // pred_region
          %s1262 = sand.u32 %s36, 1
          %s1263 = scalar_lea.sflag [#allocation13], %s1262
          %s1264 = sand.u32 %s274, 1
          %s1265 = smul.addr %s1264, 128
          %s1266 = scalar_lea.vmem [#allocation14], %s1265
          %1267 = dma.done %s1263, 2048
        $region100: #{tpu_custom_call.1} parent=87 // pred_fallthru
          _
      $region88: #{tpu_custom_call.1} parent=5 // pred_fallthru
        _
    $region6: #{tpu_custom_call.1} parent=1 // loop_footer
      %s34 = sadd.s32 1, %s30
    $region7: #{tpu_custom_call.1} parent=1 // loop_footer_branch
      %29 = sbr.rel target = $region3
    $region8: #{tpu_custom_call.1} parent=1 // loop_exit
      _
    %1268 = vsyncpa [#allocation3], 1
    %s1269 = scalar_lea.sflag [#allocation3], 1
    %1270 = vsyncpa %s1269, 1
    %1271 = vsyncpa [#allocation6], 1
    %s1272 = scalar_lea.sflag [#allocation6], 1
    %1273 = vsyncpa %s1272, 1
    %1274 = vsyncpa [#allocation9], 1
    %1275 = vsyncpa [#allocation4], 1
    %s1276 = scalar_lea.sflag [#allocation4], 1
    %1277 = vsyncpa %s1276, 1
    %1278 = vsyncpa [#allocation13], 1
    %s1279 = scalar_lea.sflag [#allocation13], 1
    %1280 = vsyncpa %s1279, 1

</llo_original>
